<compile_context>
chip_gen: v6e
topology: v6e:2x2x1
jax: 0.10.0
libtpu: 0.0.40
codegen_flags: <defaults>
</compile_context>

<pallas_src>
import functools

import jax
import jax.numpy as jnp
from jax import lax
from jax.experimental import pallas as pl
from jax.experimental.pallas import tpu as pltpu


# ----------------------------------------------------------------------------
# Fused kernels:  (E, K) @ (K, TL) -> + bias [-> LayerNorm over E] -> store
# ----------------------------------------------------------------------------
def _patch_embed_norm_kernel(col_ref, w_ref, b_ref, g_ref, beta_ref, o_ref, *,
                             eps):
    # col_ref : (1, K, TL)  bf16   im2col^T tile  (features x tokens)
    # w_ref   : (E, K)      bf16   conv weight, flattened
    # b/g/beta: (E, 1)      f32    conv bias, LN gamma, LN beta
    # o_ref   : (1, E, TL)  f32    channels-first output tile (tokens on lanes)
    col = col_ref[0]                                            # (K, TL)
    acc = jnp.dot(w_ref[...], col,
                  preferred_element_type=jnp.float32)           # (E, TL) f32
    acc = acc + b_ref[...]                                      # conv bias
    # LayerNorm over the embed (sublane) axis, per token (lane column).
    mean = jnp.mean(acc, axis=0, keepdims=True)                 # (1, TL)
    var = jnp.mean(jnp.square(acc - mean), axis=0, keepdims=True)
    acc = (acc - mean) * lax.rsqrt(var + eps)
    o_ref[0] = acc * g_ref[...] + beta_ref[...]


def _patch_embed_kernel(col_ref, w_ref, b_ref, o_ref):
    col = col_ref[0]                                            # (K, TL)
    acc = jnp.dot(w_ref[...], col,
                  preferred_element_type=jnp.float32)           # (E, TL) f32
    o_ref[0] = acc + b_ref[...]


def _pick_token_tile(Lp, K, E):
    """Largest lane-dense tile dividing the (128-padded) token count that
    keeps the double-buffered per-tile VMEM footprint small."""
    budget = 6 * 1024 * 1024
    for t in (2048, 1024, 512, 256, 128):
        if Lp % t == 0 and 2 * (K * t * 2 + E * t * 4) <= budget:
            return t
    return 128


# ----------------------------------------------------------------------------
# Wrapper
# ----------------------------------------------------------------------------
def patch_embed_pallas(x, w, b, gamma=None, beta=None, *, patch_size=4,
                       norm=True, eps=1e-5, interpret=False):
    """Fused PatchEmbed forward.

    x : (B, Cin, D, H, W) float32
    w : (E, Cin, p, p, p) conv weight, b: (E,) conv bias
    gamma, beta : (E,) LayerNorm affine (used when norm=True)
    returns (B, E, D//p, H//p, W//p) float32
    """
    p = int(patch_size)
    B, Cin, D, H, W = x.shape
    E = w.shape[0]

    # PyTorch: pad spatial dims (high side) up to multiples of patch_size.
    pad_d, pad_h, pad_w = (-D) % p, (-H) % p, (-W) % p
    if pad_d or pad_h or pad_w:
        x = jnp.pad(x, ((0, 0), (0, 0), (0, pad_d), (0, pad_h), (0, pad_w)))
        D, H, W = D + pad_d, H + pad_h, W + pad_w

    nD, nH, nW = D // p, H // p, W // p
    L = nD * nH * nW
    K = Cin * p * p * p

    # TODO(synk): patch unfold stays as one XLA transpose pass (see header).
    colT = (x.astype(jnp.bfloat16)
             .reshape(B, Cin, nD, p, nH, p, nW, p)
             .transpose(0, 1, 3, 5, 7, 2, 4, 6)   # (B, c, kd, kh, kw, od, oh, ow)
             .reshape(B, K, L))

    # Pad token axis to a multiple of 128 -> lane-dense, unmasked stores.
    Lp = ((L + 127) // 128) * 128
    if Lp != L:
        colT = jnp.pad(colT, ((0, 0), (0, 0), (0, Lp - L)))

    wm = w.reshape(E, K).astype(jnp.bfloat16)
    bias = b.reshape(E, 1).astype(jnp.float32)

    TL = _pick_token_tile(Lp, K, E)
    grid = (B, Lp // TL)

    in_specs = [
        pl.BlockSpec((1, K, TL), lambda bi, ti: (bi, 0, ti)),
        pl.BlockSpec((E, K), lambda bi, ti: (0, 0)),
        pl.BlockSpec((E, 1), lambda bi, ti: (0, 0)),
    ]
    operands = [colT, wm, bias]

    if norm:
        if gamma is None:
            gamma = jnp.ones((E,), jnp.float32)
        if beta is None:
            beta = jnp.zeros((E,), jnp.float32)
        in_specs += [pl.BlockSpec((E, 1), lambda bi, ti: (0, 0)),
                     pl.BlockSpec((E, 1), lambda bi, ti: (0, 0))]
        operands += [gamma.reshape(E, 1).astype(jnp.float32),
                     beta.reshape(E, 1).astype(jnp.float32)]
        kernel = functools.partial(_patch_embed_norm_kernel, eps=float(eps))
    else:
        kernel = _patch_embed_kernel

    cost = pl.CostEstimate(
        flops=2 * B * E * K * Lp,
        transcendentals=0,
        bytes_accessed=B * K * Lp * 2 + B * E * Lp * 4 + E * K * 2 + E * 12)

    out = pl.pallas_call(
        kernel,
        out_shape=jax.ShapeDtypeStruct((B, E, Lp), jnp.float32),
        grid=grid,
        in_specs=in_specs,
        out_specs=pl.BlockSpec((1, E, TL), lambda bi, ti: (bi, 0, ti)),
        compiler_params=pltpu.CompilerParams(
            dimension_semantics=("parallel", "parallel"),
            vmem_limit_bytes=32 * 1024 * 1024),
        cost_estimate=cost,
        interpret=interpret,
    )(*operands)

    if Lp != L:
        out = out[:, :, :L]
    # Free reshape: L -> (nD, nH, nW); layout already channels-first.
    return out.reshape(B, E, nD, nH, nW)


# ----------------------------------------------------------------------------
# Pure-JAX reference (independent of the kernel's im2col) for a sanity check.
# ----------------------------------------------------------------------------
def _reference_patch_embed(x, w, b, gamma, beta, patch, norm, eps=1e-5):
    p = patch
    pads = [(-s) % p for s in x.shape[2:]]
    if any(pads):
        x = jnp.pad(x, ((0, 0), (0, 0),
                        (0, pads[0]), (0, pads[1]), (0, pads[2])))
    y = lax.conv_general_dilated(
        x, w, window_strides=(p, p, p), padding="VALID",
        dimension_numbers=("NCDHW", "OIDHW", "NCDHW"))
    y = y + b[None, :, None, None, None]
    if norm:
        B, E = y.shape[:2]
        sp = y.shape[2:]
        t = y.reshape(B, E, -1).transpose(0, 2, 1)          # (B, L, E)
        mean = jnp.mean(t, axis=-1, keepdims=True)
        var = jnp.mean((t - mean) ** 2, axis=-1, keepdims=True)
        t = (t - mean) / jnp.sqrt(var + eps) * gamma + beta
        y = t.transpose(0, 2, 1).reshape(B, E, *sp)
    return y


# ----------------------------------------------------------------------------
if __name__ == "__main__":
    key = jax.random.PRNGKey(0)
    kx, kw, kb, kg, kbe, kx2 = jax.random.split(key, 6)

    B, Cin, D, H, W = 2, 3, 32, 32, 32
    patch, embed_dim = 4, 96

    x = jax.random.normal(kx, (B, Cin, D, H, W), jnp.float32)
    fan_in = Cin * patch ** 3
    w = jax.random.normal(kw, (embed_dim, Cin, patch, patch, patch),
                          jnp.float32) / jnp.sqrt(fan_in)
    b = 0.02 * jax.random.normal(kb, (embed_dim,), jnp.float32)
    gamma = 1.0 + 0.1 * jax.random.normal(kg, (embed_dim,), jnp.float32)
    beta = 0.05 * jax.random.normal(kbe, (embed_dim,), jnp.float32)

    # norm_layer = nn.LayerNorm path (as used with patch_norm=True).
    fwd = jax.jit(functools.partial(patch_embed_pallas,
                                    patch_size=patch, norm=True))
    out = jax.block_until_ready(fwd(x, w, b, gamma, beta))
    assert out.shape == (B, embed_dim, D // patch, H // patch, W // patch)
    ref = _reference_patch_embed(x, w, b, gamma, beta, patch, norm=True)
    err = float(jnp.max(jnp.abs(out - ref)))
    assert err < 0.15, f"norm=True max abs err {err}"

    # norm_layer = None path (module default).
    fwd_nonorm = jax.jit(functools.partial(patch_embed_pallas,
                                           patch_size=patch, norm=False))
    out2 = jax.block_until_ready(fwd_nonorm(x, w, b))
    assert out2.shape == out.shape
    ref2 = _reference_patch_embed(x, w, b, gamma, beta, patch, norm=False)
    err2 = float(jnp.max(jnp.abs(out2 - ref2)))
    assert err2 < 0.15, f"norm=False max abs err {err2}"

    # Non-multiple spatial dims (exercises spatial padding + token padding).
    x3 = jax.random.normal(kx2, (1, Cin, 10, 12, 14), jnp.float32)
    out3 = jax.block_until_ready(fwd(x3, w, b, gamma, beta))
    assert out3.shape == (1, embed_dim, 3, 3, 4)
    ref3 = _reference_patch_embed(x3, w, b, gamma, beta, patch, norm=True)
    err3 = float(jnp.max(jnp.abs(out3 - ref3)))
    assert err3 < 0.15, f"padded-case max abs err {err3}"

    print("KERNEL_OK")
</pallas_src>

<mosaic_0001>
module attributes {stable_mosaic.version = 11 : i64} {
  func.func @_patch_embed_norm_kernel(%arg0: i32, %arg1: i32, %arg2: memref<1x192x512xbf16, #tpu.memory_space<vmem>>, %arg3: memref<96x192xbf16, #tpu.memory_space<vmem>>, %arg4: memref<96x1xf32, #tpu.memory_space<vmem>>, %arg5: memref<96x1xf32, #tpu.memory_space<vmem>>, %arg6: memref<96x1xf32, #tpu.memory_space<vmem>>, %arg7: memref<1x96x512xf32, #tpu.memory_space<vmem>>) attributes {dimension_semantics = [#tpu.dimension_semantics<parallel>, #tpu.dimension_semantics<parallel>], iteration_bounds = array<i64: 2, 1>, scalar_prefetch = 0 : i64, scratch_operands = 0 : i64, tpu.core_type = #tpu.core_type<tc>, window_params = [{transform_indices = @transform_0, window_bounds = array<i64: 1, 192, 512>}, {pipeline_mode = #tpu.pipeline_mode<synchronous>, transform_indices = @transform_1, window_bounds = array<i64: 96, 192>}, {pipeline_mode = #tpu.pipeline_mode<synchronous>, transform_indices = @transform_2, window_bounds = array<i64: 96, 1>}, {pipeline_mode = #tpu.pipeline_mode<synchronous>, transform_indices = @transform_3, window_bounds = array<i64: 96, 1>}, {pipeline_mode = #tpu.pipeline_mode<synchronous>, transform_indices = @transform_4, window_bounds = array<i64: 96, 1>}, {transform_indices = @transform_5, window_bounds = array<i64: 1, 96, 512>}]} {
    %c0 = arith.constant 0 : index
    %c0_0 = arith.constant 0 : index
    %c0_1 = arith.constant 0 : index
    %0 = vector.load %arg2[%c0, %c0_0, %c0_1] : memref<1x192x512xbf16, #tpu.memory_space<vmem>>, vector<1x192x512xbf16>
    %1 = vector.shape_cast %0 : vector<1x192x512xbf16> to vector<192x512xbf16>
    %c0_2 = arith.constant 0 : index
    %c0_3 = arith.constant 0 : index
    %2 = vector.load %arg3[%c0_2, %c0_3] : memref<96x192xbf16, #tpu.memory_space<vmem>>, vector<96x192xbf16>
    %cst = arith.constant dense<0.000000e+00> : vector<96x512xf32>
    %3 = tpu.matmul %2, %1, %cst {dimension_numbers = #tpu.dot_dimension_numbers<[1], [0], [0], [1], [0, 0, 1, 1], [], []>} : vector<96x192xbf16>, vector<192x512xbf16>, vector<96x512xf32> -> vector<96x512xf32>
    %c0_4 = arith.constant 0 : index
    %c0_5 = arith.constant 0 : index
    %4 = vector.load %arg4[%c0_4, %c0_5] : memref<96x1xf32, #tpu.memory_space<vmem>>, vector<96x1xf32>
    %5 = vector.broadcast %4 : vector<96x1xf32> to vector<96x512xf32>
    %6 = arith.addf %3, %5 : vector<96x512xf32>
    %cst_6 = arith.constant dense<0.000000e+00> : vector<512xf32>
    %7 = vector.multi_reduction <add>, %6, %cst_6 [0] : vector<96x512xf32> to vector<512xf32>
    %8 = vector.shape_cast %7 : vector<512xf32> to vector<1x512xf32>
    %cst_7 = arith.constant 9.600000e+01 : f32
    %9 = vector.broadcast %cst_7 : f32 to vector<1x512xf32>
    %10 = arith.divf %8, %9 : vector<1x512xf32>
    %11 = vector.broadcast %10 : vector<1x512xf32> to vector<96x512xf32>
    %12 = arith.subf %6, %11 : vector<96x512xf32>
    %13 = arith.mulf %12, %12 : vector<96x512xf32>
    %cst_8 = arith.constant dense<0.000000e+00> : vector<512xf32>
    %14 = vector.multi_reduction <add>, %13, %cst_8 [0] : vector<96x512xf32> to vector<512xf32>
    %15 = vector.shape_cast %14 : vector<512xf32> to vector<1x512xf32>
    %cst_9 = arith.constant 9.600000e+01 : f32
    %16 = vector.broadcast %cst_9 : f32 to vector<1x512xf32>
    %17 = arith.divf %15, %16 : vector<1x512xf32>
    %18 = vector.broadcast %10 : vector<1x512xf32> to vector<96x512xf32>
    %19 = arith.subf %6, %18 : vector<96x512xf32>
    %cst_10 = arith.constant 9.99999974E-6 : f32
    %20 = vector.broadcast %cst_10 : f32 to vector<1x512xf32>
    %21 = arith.addf %17, %20 : vector<1x512xf32>
    %22 = math.rsqrt %21 : vector<1x512xf32>
    %23 = vector.broadcast %22 : vector<1x512xf32> to vector<96x512xf32>
    %24 = arith.mulf %19, %23 : vector<96x512xf32>
    %c0_11 = arith.constant 0 : index
    %c0_12 = arith.constant 0 : index
    %25 = vector.load %arg5[%c0_11, %c0_12] : memref<96x1xf32, #tpu.memory_space<vmem>>, vector<96x1xf32>
    %26 = vector.broadcast %25 : vector<96x1xf32> to vector<96x512xf32>
    %27 = arith.mulf %24, %26 : vector<96x512xf32>
    %c0_13 = arith.constant 0 : index
    %c0_14 = arith.constant 0 : index
    %28 = vector.load %arg6[%c0_13, %c0_14] : memref<96x1xf32, #tpu.memory_space<vmem>>, vector<96x1xf32>
    %29 = vector.broadcast %28 : vector<96x1xf32> to vector<96x512xf32>
    %30 = arith.addf %27, %29 : vector<96x512xf32>
    %c0_15 = arith.constant 0 : index
    %c0_16 = arith.constant 0 : index
    %c0_17 = arith.constant 0 : index
    %31 = vector.load %arg7[%c0_15, %c0_16, %c0_17] : memref<1x96x512xf32, #tpu.memory_space<vmem>>, vector<1x96x512xf32>
    %32 = vector.shape_cast %31 : vector<1x96x512xf32> to vector<96x512xf32>
    %33 = vector.shape_cast %30 : vector<96x512xf32> to vector<1x96x512xf32>
    tpu.vector_store %arg7[%c0_15, %c0_16, %c0_17], %33 {strides = array<i32>} : memref<1x96x512xf32, #tpu.memory_space<vmem>>, vector<1x96x512xf32>,
    return
  }
  func.func @transform_0(%arg0: i32, %arg1: i32) -> (i32, i32, i32) {
    %c0_i32 = arith.constant 0 : i32
    %c0_i32_0 = arith.constant 0 : i32
    return %arg0, %c0_i32, %arg1 : i32, i32, i32
  }
  func.func @transform_1(%arg0: i32, %arg1: i32) -> (i32, i32) {
    %c0_i32 = arith.constant 0 : i32
    %c0_i32_0 = arith.constant 0 : i32
    %c0_i32_1 = arith.constant 0 : i32
    return %c0_i32, %c0_i32_0 : i32, i32
  }
  func.func @transform_2(%arg0: i32, %arg1: i32) -> (i32, i32) {
    %c0_i32 = arith.constant 0 : i32
    %c0_i32_0 = arith.constant 0 : i32
    %c0_i32_1 = arith.constant 0 : i32
    return %c0_i32, %c0_i32_0 : i32, i32
  }
  func.func @transform_3(%arg0: i32, %arg1: i32) -> (i32, i32) {
    %c0_i32 = arith.constant 0 : i32
    %c0_i32_0 = arith.constant 0 : i32
    %c0_i32_1 = arith.constant 0 : i32
    return %c0_i32, %c0_i32_0 : i32, i32
  }
  func.func @transform_4(%arg0: i32, %arg1: i32) -> (i32, i32) {
    %c0_i32 = arith.constant 0 : i32
    %c0_i32_0 = arith.constant 0 : i32
    %c0_i32_1 = arith.constant 0 : i32
    return %c0_i32, %c0_i32_0 : i32, i32
  }
  func.func @transform_5(%arg0: i32, %arg1: i32) -> (i32, i32, i32) {
    %c0_i32 = arith.constant 0 : i32
    %c0_i32_0 = arith.constant 0 : i32
    return %arg0, %c0_i32, %arg1 : i32, i32, i32
  }
}

</mosaic_0001>

<llo_original>
// kernel: patch_embed_pallas.1
$region0: #{patch_embed_pallas.1}
  #allocation0 [shape = 'u32[]', space=smem, size = 0x4, offset = 0x4, fixed_abs, tag = 'smem constant byte address 0x4 - core index']
  #allocation1 [shape = 'u32[144,128]{1,0:T(1,128)}', space=vmem, size = 0x12000, scoped, tag = 'internal scratch']
  %s0 = inlined_call_operand.vmem [shape: bf16[2,192,512], index: 0, kind: input, shape index: {}]
  %s1 = inlined_call_operand.vmem [shape: bf16[96,192], index: 1, kind: input, shape index: {}]
  %s2 = inlined_call_operand.vmem [shape: f32[96,1], index: 2, kind: input, shape index: {}]
  %s3 = inlined_call_operand.vmem [shape: f32[96,1], index: 3, kind: input, shape index: {}]
  %s4 = inlined_call_operand.vmem [shape: f32[96,1], index: 4, kind: input, shape index: {}]
  %s5 = inlined_call_operand.vmem [shape: f32[2,96,512], index: 5, kind: output, shape index: {}]
  %s6 = sld [smem:[#allocation0]]
  $region53: #{patch_embed_pallas.1} parent=0
    _
  %s8 = ssub.s32 1, %s6
  %s9 = scalar_select 0, %s8, %s6
  loop: start=0, step=1, limit=4
  $region2: #{patch_embed_pallas.1} parent=0 // loop_pre_header
    _
  $region3: #{patch_embed_pallas.1} parent=0 // loop_header
    %s11 = sphi 0, %s15
    %p12 = scmp.ge.s32.totalorder %s11, 4
    %s18 = sphi 0, %s30
    %s19 = sphi 0, %s26
    %s20 = sphi 0, %s18
    %s21 = sphi 0, %s19
    %s22 = sphi 0, %s20
    %s23 = sphi 0, %s21
    %s35 = sphi 0, %s37
    %s38 = sphi 0, %s35
    %s39 = sphi 0, %s38
    %s55 = sphi 0, %s39
    %s59 = sphi 0, %s59
    %s61 = sphi 0, %s59
    %s62 = sphi 0, %s61
    %s76 = sphi 0, %s62
    %s80 = sphi 0, %s80
    %s82 = sphi 0, %s80
    %s83 = sphi 0, %s82
    %s97 = sphi 0, %s83
    %s101 = sphi 0, %s101
    %s103 = sphi 0, %s101
    %s104 = sphi 0, %s103
    %s118 = sphi 0, %s104
    %s122 = sphi 0, %s122
    %s124 = sphi 0, %s122
    %s125 = sphi 0, %s124
    %s139 = sphi 0, %s125
    %s147 = sphi 0, %s149
    %s150 = sphi 0, %s147
    %s151 = sphi 0, %s150
    %s167 = sphi 0, %s151
  $region4: #{patch_embed_pallas.1} parent=0 // loop_header_branch
    %14 = sbr.rel (%p12) target = $region8
  $region5: #{patch_embed_pallas.1} parent=0 // loop_body
    %s16 = ssub.s32 %s11, 1
    %s17 = ssub.s32 %s11, 2
    %s24 = sadd.s32 1, %s19
    %p25 = scmp.ge.s32.totalorder %s24, 1
    %s26 = scalar_select %p25, 0, %s24
    %s27 = sadd.s32 1, %s18
    %s28 = scalar_select %p25, %s27, %s18
    %p29 = scmp.ge.s32.totalorder %s28, 2
    %s30 = scalar_select %p29, 0, %s28
    %s31 = ssub.s32 %s18, %s30
    %s32 = ssub.s32 %s19, %s26
    %s33 = sor.u32 %s31, %s32
    %p34 = scmp.eq.s32.totalorder %s33, 0
    %s36 = sadd.s32 %s35, 1
    %s37 = scalar_select %p34, %s35, %s36
    %p40 = pneg %p34
    %p41 = scmp.eq.s32.totalorder %s11, 1
    %p42 = por %p40, %p41
    %p43 = scmp.ne.s32.totalorder %s35, %s38
    %p44 = scmp.eq.s32.totalorder %s11, 0
    %p45 = por %p43, %p44
    %p46 = scmp.ne.s32.totalorder %s35, %s38
    %p47 = scmp.eq.s32.totalorder %s16, 1
    %p48 = por %p46, %p47
    %p49 = scmp.ne.s32.totalorder %s38, %s39
    %p50 = scmp.eq.s32.totalorder %s16, 0
    %p51 = por %p49, %p50
    %p52 = scmp.ne.s32.totalorder %s38, %s39
    %p53 = scmp.eq.s32.totalorder %s17, 1
    %p54 = por %p52, %p53
    %p56 = scmp.ne.s32.totalorder %s39, %s55
    %p57 = scmp.eq.s32.totalorder %s17, 0
    %p58 = por %p56, %p57
    %s60 = sadd.s32 %s59, 1
    %p63 = scmp.eq.s32.totalorder %s11, 1
    %p64 = scmp.ne.s32.totalorder %s59, %s61
    %p65 = scmp.eq.s32.totalorder %s11, 0
    %p66 = por %p64, %p65
    %p67 = scmp.ne.s32.totalorder %s59, %s61
    %p68 = scmp.eq.s32.totalorder %s16, 1
    %p69 = por %p67, %p68
    %p70 = scmp.ne.s32.totalorder %s61, %s62
    %p71 = scmp.eq.s32.totalorder %s16, 0
    %p72 = por %p70, %p71
    %p73 = scmp.ne.s32.totalorder %s61, %s62
    %p74 = scmp.eq.s32.totalorder %s17, 1
    %p75 = por %p73, %p74
    %p77 = scmp.ne.s32.totalorder %s62, %s76
    %p78 = scmp.eq.s32.totalorder %s17, 0
    %p79 = por %p77, %p78
    %s81 = sadd.s32 %s80, 1
    %p84 = scmp.eq.s32.totalorder %s11, 1
    %p85 = scmp.ne.s32.totalorder %s80, %s82
    %p86 = scmp.eq.s32.totalorder %s11, 0
    %p87 = por %p85, %p86
    %p88 = scmp.ne.s32.totalorder %s80, %s82
    %p89 = scmp.eq.s32.totalorder %s16, 1
    %p90 = por %p88, %p89
    %p91 = scmp.ne.s32.totalorder %s82, %s83
    %p92 = scmp.eq.s32.totalorder %s16, 0
    %p93 = por %p91, %p92
    %p94 = scmp.ne.s32.totalorder %s82, %s83
    %p95 = scmp.eq.s32.totalorder %s17, 1
    %p96 = por %p94, %p95
    %p98 = scmp.ne.s32.totalorder %s83, %s97
    %p99 = scmp.eq.s32.totalorder %s17, 0
    %p100 = por %p98, %p99
    %s102 = sadd.s32 %s101, 1
    %p105 = scmp.eq.s32.totalorder %s11, 1
    %p106 = scmp.ne.s32.totalorder %s101, %s103
    %p107 = scmp.eq.s32.totalorder %s11, 0
    %p108 = por %p106, %p107
    %p109 = scmp.ne.s32.totalorder %s101, %s103
    %p110 = scmp.eq.s32.totalorder %s16, 1
    %p111 = por %p109, %p110
    %p112 = scmp.ne.s32.totalorder %s103, %s104
    %p113 = scmp.eq.s32.totalorder %s16, 0
    %p114 = por %p112, %p113
    %p115 = scmp.ne.s32.totalorder %s103, %s104
    %p116 = scmp.eq.s32.totalorder %s17, 1
    %p117 = por %p115, %p116
    %p119 = scmp.ne.s32.totalorder %s104, %s118
    %p120 = scmp.eq.s32.totalorder %s17, 0
    %p121 = por %p119, %p120
    %s123 = sadd.s32 %s122, 1
    %p126 = scmp.eq.s32.totalorder %s11, 1
    %p127 = scmp.ne.s32.totalorder %s122, %s124
    %p128 = scmp.eq.s32.totalorder %s11, 0
    %p129 = por %p127, %p128
    %p130 = scmp.ne.s32.totalorder %s122, %s124
    %p131 = scmp.eq.s32.totalorder %s16, 1
    %p132 = por %p130, %p131
    %p133 = scmp.ne.s32.totalorder %s124, %s125
    %p134 = scmp.eq.s32.totalorder %s16, 0
    %p135 = por %p133, %p134
    %p136 = scmp.ne.s32.totalorder %s124, %s125
    %p137 = scmp.eq.s32.totalorder %s17, 1
    %p138 = por %p136, %p137
    %p140 = scmp.ne.s32.totalorder %s125, %s139
    %p141 = scmp.eq.s32.totalorder %s17, 0
    %p142 = por %p140, %p141
    %s143 = ssub.s32 %s18, %s30
    %s144 = ssub.s32 %s19, %s26
    %s145 = sor.u32 %s143, %s144
    %p146 = scmp.eq.s32.totalorder %s145, 0
    %s148 = sadd.s32 %s147, 1
    %s149 = scalar_select %p146, %s147, %s148
    %p152 = pneg %p146
    %p153 = scmp.eq.s32.totalorder %s11, 1
    %p154 = por %p152, %p153
    %p155 = scmp.ne.s32.totalorder %s147, %s150
    %p156 = scmp.eq.s32.totalorder %s11, 0
    %p157 = por %p155, %p156
    %p158 = scmp.ne.s32.totalorder %s147, %s150
    %p159 = scmp.eq.s32.totalorder %s16, 1
    %p160 = por %p158, %p159
    %p161 = scmp.ne.s32.totalorder %s150, %s151
    %p162 = scmp.eq.s32.totalorder %s16, 0
    %p163 = por %p161, %p162
    %p164 = scmp.ne.s32.totalorder %s150, %s151
    %p165 = scmp.eq.s32.totalorder %s17, 1
    %p166 = por %p164, %p165
    %p168 = scmp.ne.s32.totalorder %s151, %s167
    %p169 = scmp.eq.s32.totalorder %s17, 0
    %p170 = por %p168, %p169
    %p171 = scmp.le.s32.totalorder 1, %s11
    %p172 = scmp.lt.s32.totalorder %s11, 3
    %p173 = pnand %p171, %p172
    %p174 = pneg %p173
    // Predicated region
    $region9: #{patch_embed_pallas.1} parent=5 // pred_check
      _
    $region10: #{patch_embed_pallas.1} parent=5 // pred_check_branch
      %176 = sbr.rel (%p173) target = $region12
    $region11: #{patch_embed_pallas.1} parent=5 // pred_region
      %s177 = ssub.s32 %s11, 1
      // Predicated region
      $region13: #{patch_embed_pallas.1} parent=11 // pred_check
        %p178 = pneg %p72
      $region14: #{patch_embed_pallas.1} parent=11 // pred_check_branch
        %180 = sbr.rel (%p178) target = $region16
      $region15: #{patch_embed_pallas.1} parent=11 // pred_region
        _
      $region16: #{patch_embed_pallas.1} parent=11 // pred_fallthru
        _
      // Predicated region
      $region17: #{patch_embed_pallas.1} parent=11 // pred_check
        %p181 = pneg %p93
      $region18: #{patch_embed_pallas.1} parent=11 // pred_check_branch
        %183 = sbr.rel (%p181) target = $region20
      $region19: #{patch_embed_pallas.1} parent=11 // pred_region
        _
      $region20: #{patch_embed_pallas.1} parent=11 // pred_fallthru
        _
      // Predicated region
      $region21: #{patch_embed_pallas.1} parent=11 // pred_check
        %p184 = pneg %p114
      $region22: #{patch_embed_pallas.1} parent=11 // pred_check_branch
        %186 = sbr.rel (%p184) target = $region24
      $region23: #{patch_embed_pallas.1} parent=11 // pred_region
        _
      $region24: #{patch_embed_pallas.1} parent=11 // pred_fallthru
        _
      // Predicated region
      $region25: #{patch_embed_pallas.1} parent=11 // pred_check
        %p187 = pneg %p135
      $region26: #{patch_embed_pallas.1} parent=11 // pred_check_branch
        %189 = sbr.rel (%p187) target = $region28
      $region27: #{patch_embed_pallas.1} parent=11 // pred_region
        _
      $region28: #{patch_embed_pallas.1} parent=11 // pred_fallthru
        _
    $region12: #{patch_embed_pallas.1} parent=5 // pred_fallthru
      _
    %p190 = scmp.lt.s32.totalorder %s11, 2
    // Predicated region
    $region29: #{patch_embed_pallas.1} parent=5 // pred_check
      %p191 = pneg %p190
    $region30: #{patch_embed_pallas.1} parent=5 // pred_check_branch
      %193 = sbr.rel (%p191) target = $region32
    $region31: #{patch_embed_pallas.1} parent=5 // pred_region
      // Predicated region
      $region33: #{patch_embed_pallas.1} parent=31 // pred_check
        %p194 = pneg %p45
      $region34: #{patch_embed_pallas.1} parent=31 // pred_check_branch
        %196 = sbr.rel (%p194) target = $region36
      $region35: #{patch_embed_pallas.1} parent=31 // pred_region
        %s197 = smul.u32 4, %s19
        %p198 = scmp.lt.s32.totalorder %s18, 1
        %s199 = scalar_select %p198, %s18, 1
        %p200 = scmp.lt.s32.totalorder %s197, 3
        %s201 = scalar_select %p200, %s197, 3
        %s202 = smul.addr %s199, 96
        %s203 = sadd.s32 %s201, %s202
        %s204 = smul.addr %s203, 4
        %s205 = scalar_lea.vmem %s0, %s204
        %s206 = smul.u32 4, %s19
      $region36: #{patch_embed_pallas.1} parent=31 // pred_fallthru
        _
    $region32: #{patch_embed_pallas.1} parent=5 // pred_fallthru
      _
    %p207 = scmp.le.s32.totalorder 1, %s11
    %p208 = scmp.lt.s32.totalorder %s11, 3
    %p209 = pnand %p207, %p208
    %p210 = pneg %p209
    // Predicated region
    $region37: #{patch_embed_pallas.1} parent=5 // pred_check
      _
    $region38: #{patch_embed_pallas.1} parent=5 // pred_check_branch
      %212 = sbr.rel (%p209) target = $region40
    $region39: #{patch_embed_pallas.1} parent=5 // pred_region
      %s213 = ssub.s32 %s11, 1
      %s214 = smul.u32 4, %s21
      %p215 = scmp.lt.s32.totalorder %s20, 1
      %s216 = scalar_select %p215, %s20, 1
      %p217 = scmp.lt.s32.totalorder %s214, 3
      %s218 = scalar_select %p217, %s214, 3
      %s219 = smul.addr %s216, 96
      %s220 = sadd.s32 %s218, %s219
      %s221 = smul.addr %s220, 4
      %s222 = scalar_lea.vmem %s0, %s221
      %p223 = pneg %p51
      %p224 = pneg %p48
      %p225 = pneg %p72
      %p226 = pneg %p69
      %p227 = pneg %p93
      %p228 = pneg %p90
      %p229 = pneg %p114
      %p230 = pneg %p111
      %p231 = pneg %p135
      %p232 = pneg %p132
      %p233 = pneg %p163
      %p234 = pneg %p160
      %s235 = smul.u32 4, %s21
      %p236 = scmp.lt.s32.totalorder %s20, 1
      %s237 = scalar_select %p236, %s20, 1
      %p238 = scmp.lt.s32.totalorder %s235, 3
      %s239 = scalar_select %p238, %s235, 3
      %s240 = smul.addr %s237, 48
      %s241 = sadd.s32 %s239, %s240
      %s242 = smul.addr %s241, 8
      %s243 = scalar_lea.vmem %s5, %s242
      %s244 = smul.u32 4, %s21
      %p245 = scmp.lt.s32.totalorder %s20, 1
      %s246 = scalar_select %p245, %s20, 1
      %p247 = scmp.lt.s32.totalorder %s244, 3
      %s248 = scalar_select %p247, %s244, 3
      %s249 = smul.addr %s246, 96
      %s250 = sadd.s32 %s248, %s249
      %s251 = smul.addr %s250, 4
      %s252 = scalar_lea.vmem %s0, %s251
      %s253 = smul.u32 4, %s21
      %s254 = smul.u32 4, %s21
      %p255 = scmp.lt.s32.totalorder %s20, 1
      %s256 = scalar_select %p255, %s20, 1
      %p257 = scmp.lt.s32.totalorder %s254, 3
      %s258 = scalar_select %p257, %s254, 3
      %s259 = smul.addr %s256, 48
      %s260 = sadd.s32 %s258, %s259
      %s261 = smul.addr %s260, 8
      %s262 = scalar_lea.vmem %s5, %s261
      %s263 = smul.u32 4, %s21
      %v265 = vld [vmem:[%s252] sm:$0xff]
      %v266 = vld [vmem:[%s252 + $0x8] sm:$0xff]
      %v267 = vld [vmem:[%s252 + $0x10] sm:$0xff]
      %v268 = vld [vmem:[%s252 + $0x18] sm:$0xff]
      %v269 = vld [vmem:[%s252 + $0x20] sm:$0xff]
      %v270 = vld [vmem:[%s252 + $0x28] sm:$0xff]
      %v271 = vld [vmem:[%s252 + $0x30] sm:$0xff]
      %v272 = vld [vmem:[%s252 + $0x38] sm:$0xff]
      %v273 = vld [vmem:[%s252 + $0x40] sm:$0xff]
      %v274 = vld [vmem:[%s252 + $0x48] sm:$0xff]
      %v275 = vld [vmem:[%s252 + $0x50] sm:$0xff]
      %v276 = vld [vmem:[%s252 + $0x58] sm:$0xff]
      %v277 = vld [vmem:[%s252 + $0x60] sm:$0xff]
      %v278 = vld [vmem:[%s252 + $0x68] sm:$0xff]
      %v279 = vld [vmem:[%s252 + $0x70] sm:$0xff]
      %v280 = vld [vmem:[%s252 + $0x78] sm:$0xff]
      %v281 = vld [vmem:[%s252 + $0x80] sm:$0xff]
      %v282 = vld [vmem:[%s252 + $0x88] sm:$0xff]
      %v283 = vld [vmem:[%s252 + $0x90] sm:$0xff]
      %v284 = vld [vmem:[%s252 + $0x98] sm:$0xff]
      %v285 = vld [vmem:[%s252 + $0xa0] sm:$0xff]
      %v286 = vld [vmem:[%s252 + $0xa8] sm:$0xff]
      %v287 = vld [vmem:[%s252 + $0xb0] sm:$0xff]
      %v288 = vld [vmem:[%s252 + $0xb8] sm:$0xff]
      %v289 = vld [vmem:[%s252 + $0xc0] sm:$0xff]
      %v290 = vld [vmem:[%s252 + $0xc8] sm:$0xff]
      %v291 = vld [vmem:[%s252 + $0xd0] sm:$0xff]
      %v292 = vld [vmem:[%s252 + $0xd8] sm:$0xff]
      %v293 = vld [vmem:[%s252 + $0xe0] sm:$0xff]
      %v294 = vld [vmem:[%s252 + $0xe8] sm:$0xff]
      %v295 = vld [vmem:[%s252 + $0xf0] sm:$0xff]
      %v296 = vld [vmem:[%s252 + $0xf8] sm:$0xff]
      %v297 = vld [vmem:[%s252 + $0x100] sm:$0xff]
      %v298 = vld [vmem:[%s252 + $0x108] sm:$0xff]
      %v299 = vld [vmem:[%s252 + $0x110] sm:$0xff]
      %v300 = vld [vmem:[%s252 + $0x118] sm:$0xff]
      %v301 = vld [vmem:[%s252 + $0x120] sm:$0xff]
      %v302 = vld [vmem:[%s252 + $0x128] sm:$0xff]
      %v303 = vld [vmem:[%s252 + $0x130] sm:$0xff]
      %v304 = vld [vmem:[%s252 + $0x138] sm:$0xff]
      %v305 = vld [vmem:[%s252 + $0x140] sm:$0xff]
      %v306 = vld [vmem:[%s252 + $0x148] sm:$0xff]
      %v307 = vld [vmem:[%s252 + $0x150] sm:$0xff]
      %v308 = vld [vmem:[%s252 + $0x158] sm:$0xff]
      %v309 = vld [vmem:[%s252 + $0x160] sm:$0xff]
      %v310 = vld [vmem:[%s252 + $0x168] sm:$0xff]
      %v311 = vld [vmem:[%s252 + $0x170] sm:$0xff]
      %v312 = vld [vmem:[%s252 + $0x178] sm:$0xff]
      %v313 = vld [vmem:[%s1] sm:$0xff]
      %v314 = vld [vmem:[%s1 + $0x8] sm:$0xff]
      %v315 = vld [vmem:[%s1 + $0x10] sm:$0xff]
      %v316 = vld [vmem:[%s1 + $0x18] sm:$0xff]
      %v317 = vld [vmem:[%s1 + $0x20] sm:$0xff]
      %v318 = vld [vmem:[%s1 + $0x28] sm:$0xff]
      %v319 = vld [vmem:[%s1 + $0x30] sm:$0xff]
      %v320 = vld [vmem:[%s1 + $0x38] sm:$0xff]
      %v321 = vld [vmem:[%s1 + $0x40] sm:$0xff]
      %v322 = vld [vmem:[%s1 + $0x48] sm:$0xff]
      %v323 = vld [vmem:[%s1 + $0x50] sm:$0xff]
      %v324 = vld [vmem:[%s1 + $0x58] sm:$0xff]
      %v325 = vld [vmem:[%s2] sm:$0xff]
      %v326 = vld [vmem:[%s2 + $0x8] sm:$0xff]
      %v327 = vld [vmem:[%s2 + $0x10] sm:$0xff]
      %v328 = vld [vmem:[%s2 + $0x18] sm:$0xff]
      %v329 = vld [vmem:[%s2 + $0x20] sm:$0xff]
      %v330 = vld [vmem:[%s2 + $0x28] sm:$0xff]
      %v331 = vld [vmem:[%s2 + $0x30] sm:$0xff]
      %v332 = vld [vmem:[%s2 + $0x38] sm:$0xff]
      %v333 = vld [vmem:[%s2 + $0x40] sm:$0xff]
      %v334 = vld [vmem:[%s2 + $0x48] sm:$0xff]
      %v335 = vld [vmem:[%s2 + $0x50] sm:$0xff]
      %v336 = vld [vmem:[%s2 + $0x58] sm:$0xff]
      %338 = vset.pattern.permute.xlu0 0
      %339 = vperm.xlu0 %338, %v325
      %v340 = vpop.permute.xlu0 %339
      %343 = vset.pattern.permute.xlu0 0
      %344 = vperm.xlu0 %343, %v326
      %v345 = vpop.permute.xlu0 %344
      %348 = vset.pattern.permute.xlu0 0
      %349 = vperm.xlu0 %348, %v327
      %v350 = vpop.permute.xlu0 %349
      %353 = vset.pattern.permute.xlu0 0
      %354 = vperm.xlu0 %353, %v328
      %v355 = vpop.permute.xlu0 %354
      %358 = vset.pattern.permute.xlu0 0
      %359 = vperm.xlu0 %358, %v329
      %v360 = vpop.permute.xlu0 %359
      %363 = vset.pattern.permute.xlu0 0
      %364 = vperm.xlu0 %363, %v330
      %v365 = vpop.permute.xlu0 %364
      %368 = vset.pattern.permute.xlu0 0
      %369 = vperm.xlu0 %368, %v331
      %v370 = vpop.permute.xlu0 %369
      %373 = vset.pattern.permute.xlu0 0
      %374 = vperm.xlu0 %373, %v332
      %v375 = vpop.permute.xlu0 %374
      %378 = vset.pattern.permute.xlu0 0
      %379 = vperm.xlu0 %378, %v333
      %v380 = vpop.permute.xlu0 %379
      %383 = vset.pattern.permute.xlu0 0
      %384 = vperm.xlu0 %383, %v334
      %v385 = vpop.permute.xlu0 %384
      %388 = vset.pattern.permute.xlu0 0
      %389 = vperm.xlu0 %388, %v335
      %v390 = vpop.permute.xlu0 %389
      %393 = vset.pattern.permute.xlu0 0
      %394 = vperm.xlu0 %393, %v336
      %v395 = vpop.permute.xlu0 %394
      %v409 = vunpack.c.l.b16 %v313
      %v410 = vunpack.c.h.b16 %v313
      %v411 = vunpack.c.l.b16 %v314
      %v412 = vunpack.c.h.b16 %v314
      %v413 = vunpack.c.l.b16 %v315
      %v414 = vunpack.c.h.b16 %v315
      %v415 = vunpack.c.l.b16 %v316
      %v416 = vunpack.c.h.b16 %v316
      %v417 = vunpack.c.l.b16 %v317
      %v418 = vunpack.c.h.b16 %v317
      %v419 = vunpack.c.l.b16 %v318
      %v420 = vunpack.c.h.b16 %v318
      %v421 = vunpack.c.l.b16 %v319
      %v422 = vunpack.c.h.b16 %v319
      %v423 = vunpack.c.l.b16 %v320
      %v424 = vunpack.c.h.b16 %v320
      %v425 = vunpack.c.l.b16 %v321
      %v426 = vunpack.c.h.b16 %v321
      %v427 = vunpack.c.l.b16 %v322
      %v428 = vunpack.c.h.b16 %v322
      %v429 = vunpack.c.l.b16 %v323
      %v430 = vunpack.c.h.b16 %v323
      %v431 = vunpack.c.l.b16 %v324
      %v432 = vunpack.c.h.b16 %v324
      %v433 = vpack.c.b16 %v411, %v409
      %v434 = vpack.c.b16 %v412, %v410
      %v435 = vpack.c.b16 %v415, %v413
      %v436 = vpack.c.b16 %v416, %v414
      %v437 = vpack.c.b16 %v419, %v417
      %v438 = vpack.c.b16 %v420, %v418
      %v439 = vpack.c.b16 %v423, %v421
      %v440 = vpack.c.b16 %v424, %v422
      %v441 = vpack.c.b16 %v427, %v425
      %v442 = vpack.c.b16 %v428, %v426
      %v443 = vpack.c.b16 %v431, %v429
      %v444 = vpack.c.b16 %v432, %v430
      %v499 = vunpack.c.l.b16 %v265
      %v500 = vunpack.c.h.b16 %v265
      %v501 = vunpack.c.l.b16 %v266
      %v502 = vunpack.c.h.b16 %v266
      %v503 = vunpack.c.l.b16 %v267
      %v504 = vunpack.c.h.b16 %v267
      %v505 = vunpack.c.l.b16 %v268
      %v506 = vunpack.c.h.b16 %v268
      %v507 = vunpack.c.l.b16 %v269
      %v508 = vunpack.c.h.b16 %v269
      %v509 = vunpack.c.l.b16 %v270
      %v510 = vunpack.c.h.b16 %v270
      %v511 = vunpack.c.l.b16 %v271
      %v512 = vunpack.c.h.b16 %v271
      %v513 = vunpack.c.l.b16 %v272
      %v514 = vunpack.c.h.b16 %v272
      %v515 = vunpack.c.l.b16 %v273
      %v516 = vunpack.c.h.b16 %v273
      %v517 = vunpack.c.l.b16 %v274
      %v518 = vunpack.c.h.b16 %v274
      %v519 = vunpack.c.l.b16 %v275
      %v520 = vunpack.c.h.b16 %v275
      %v521 = vunpack.c.l.b16 %v276
      %v522 = vunpack.c.h.b16 %v276
      %v523 = vunpack.c.l.b16 %v277
      %v524 = vunpack.c.h.b16 %v277
      %v525 = vunpack.c.l.b16 %v278
      %v526 = vunpack.c.h.b16 %v278
      %v527 = vunpack.c.l.b16 %v279
      %v528 = vunpack.c.h.b16 %v279
      %v529 = vunpack.c.l.b16 %v280
      %v530 = vunpack.c.h.b16 %v280
      %v531 = vunpack.c.l.b16 %v281
      %v532 = vunpack.c.h.b16 %v281
      %v533 = vunpack.c.l.b16 %v282
      %v534 = vunpack.c.h.b16 %v282
      %v535 = vunpack.c.l.b16 %v283
      %v536 = vunpack.c.h.b16 %v283
      %v537 = vunpack.c.l.b16 %v284
      %v538 = vunpack.c.h.b16 %v284
      %v539 = vunpack.c.l.b16 %v285
      %v540 = vunpack.c.h.b16 %v285
      %v541 = vunpack.c.l.b16 %v286
      %v542 = vunpack.c.h.b16 %v286
      %v543 = vunpack.c.l.b16 %v287
      %v544 = vunpack.c.h.b16 %v287
      %v545 = vunpack.c.l.b16 %v288
      %v546 = vunpack.c.h.b16 %v288
      %v547 = vunpack.c.l.b16 %v289
      %v548 = vunpack.c.h.b16 %v289
      %v549 = vunpack.c.l.b16 %v290
      %v550 = vunpack.c.h.b16 %v290
      %v551 = vunpack.c.l.b16 %v291
      %v552 = vunpack.c.h.b16 %v291
      %v553 = vunpack.c.l.b16 %v292
      %v554 = vunpack.c.h.b16 %v292
      %v555 = vunpack.c.l.b16 %v293
      %v556 = vunpack.c.h.b16 %v293
      %v557 = vunpack.c.l.b16 %v294
      %v558 = vunpack.c.h.b16 %v294
      %v559 = vunpack.c.l.b16 %v295
      %v560 = vunpack.c.h.b16 %v295
      %v561 = vunpack.c.l.b16 %v296
      %v562 = vunpack.c.h.b16 %v296
      %v563 = vunpack.c.l.b16 %v297
      %v564 = vunpack.c.h.b16 %v297
      %v565 = vunpack.c.l.b16 %v298
      %v566 = vunpack.c.h.b16 %v298
      %v567 = vunpack.c.l.b16 %v299
      %v568 = vunpack.c.h.b16 %v299
      %v569 = vunpack.c.l.b16 %v300
      %v570 = vunpack.c.h.b16 %v300
      %v571 = vunpack.c.l.b16 %v301
      %v572 = vunpack.c.h.b16 %v301
      %v573 = vunpack.c.l.b16 %v302
      %v574 = vunpack.c.h.b16 %v302
      %v575 = vunpack.c.l.b16 %v303
      %v576 = vunpack.c.h.b16 %v303
      %v577 = vunpack.c.l.b16 %v304
      %v578 = vunpack.c.h.b16 %v304
      %v579 = vunpack.c.l.b16 %v305
      %v580 = vunpack.c.h.b16 %v305
      %v581 = vunpack.c.l.b16 %v306
      %v582 = vunpack.c.h.b16 %v306
      %v583 = vunpack.c.l.b16 %v307
      %v584 = vunpack.c.h.b16 %v307
      %v585 = vunpack.c.l.b16 %v308
      %v586 = vunpack.c.h.b16 %v308
      %v587 = vunpack.c.l.b16 %v309
      %v588 = vunpack.c.h.b16 %v309
      %v589 = vunpack.c.l.b16 %v310
      %v590 = vunpack.c.h.b16 %v310
      %v591 = vunpack.c.l.b16 %v311
      %v592 = vunpack.c.h.b16 %v311
      %v593 = vunpack.c.l.b16 %v312
      %v594 = vunpack.c.h.b16 %v312
      %v595 = vpack.c.b16 %v503, %v499
      %v596 = vpack.c.b16 %v504, %v500
      %v597 = vpack.c.b16 %v505, %v501
      %v598 = vpack.c.b16 %v506, %v502
      %v599 = vpack.c.b16 %v511, %v507
      %v600 = vpack.c.b16 %v512, %v508
      %v601 = vpack.c.b16 %v513, %v509
      %v602 = vpack.c.b16 %v514, %v510
      %v603 = vpack.c.b16 %v519, %v515
      %v604 = vpack.c.b16 %v520, %v516
      %v605 = vpack.c.b16 %v521, %v517
      %v606 = vpack.c.b16 %v522, %v518
      %v607 = vpack.c.b16 %v527, %v523
      %v608 = vpack.c.b16 %v528, %v524
      %v609 = vpack.c.b16 %v529, %v525
      %v610 = vpack.c.b16 %v530, %v526
      %v611 = vpack.c.b16 %v535, %v531
      %v612 = vpack.c.b16 %v536, %v532
      %v613 = vpack.c.b16 %v537, %v533
      %v614 = vpack.c.b16 %v538, %v534
      %v615 = vpack.c.b16 %v543, %v539
      %v616 = vpack.c.b16 %v544, %v540
      %v617 = vpack.c.b16 %v545, %v541
      %v618 = vpack.c.b16 %v546, %v542
      %v619 = vpack.c.b16 %v551, %v547
      %v620 = vpack.c.b16 %v552, %v548
      %v621 = vpack.c.b16 %v553, %v549
      %v622 = vpack.c.b16 %v554, %v550
      %v623 = vpack.c.b16 %v559, %v555
      %v624 = vpack.c.b16 %v560, %v556
      %v625 = vpack.c.b16 %v561, %v557
      %v626 = vpack.c.b16 %v562, %v558
      %v627 = vpack.c.b16 %v567, %v563
      %v628 = vpack.c.b16 %v568, %v564
      %v629 = vpack.c.b16 %v569, %v565
      %v630 = vpack.c.b16 %v570, %v566
      %v631 = vpack.c.b16 %v575, %v571
      %v632 = vpack.c.b16 %v576, %v572
      %v633 = vpack.c.b16 %v577, %v573
      %v634 = vpack.c.b16 %v578, %v574
      %v635 = vpack.c.b16 %v583, %v579
      %v636 = vpack.c.b16 %v584, %v580
      %v637 = vpack.c.b16 %v585, %v581
      %v638 = vpack.c.b16 %v586, %v582
      %v639 = vpack.c.b16 %v591, %v587
      %v640 = vpack.c.b16 %v592, %v588
      %v641 = vpack.c.b16 %v593, %v589
      %v642 = vpack.c.b16 %v594, %v590
      %vm691 = vcmask 523264
      %v693 = vsel %vm691, %v434, 0
      %v696 = vsel %vm691, %v436, 0
      %v699 = vsel %vm691, %v438, 0
      %v702 = vsel %vm691, %v440, 0
      %v705 = vsel %vm691, %v442, 0
      %v708 = vsel %vm691, %v444, 0
      %710 = vmatprep.subr.bf16.mxu0 %v624
      %711 = vmatpush1.bf16.msra.mxu0 %v623
      %712 = vmatprep.subr.bf16.mxu0 %v620
      %713 = vmatpush1.bf16.msra.mxu0 %v619
      %714 = vmatprep.subr.bf16.mxu0 %v616
      %715 = vmatpush1.bf16.msra.mxu0 %v615
      %716 = vmatprep.subr.bf16.mxu0 %v612
      %717 = vmatpush1.bf16.msra.mxu0 %v611
      %718 = vmatprep.subr.bf16.mxu0 %v608
      %719 = vmatpush1.bf16.msra.mxu0 %v607
      %720 = vmatprep.subr.bf16.mxu0 %v604
      %721 = vmatpush1.bf16.msra.mxu0 %v603
      %722 = vmatprep.subr.bf16.mxu0 %v600
      %723 = vmatpush1.bf16.msra.mxu0 %v599
      %724 = vmatprep.subr.bf16.mxu0 %v596
      %725 = vmatpush1.bf16.msra.mxu0 %v595
      %726 = vmatprep.subr.bf16.mxu0 0
      %727 = vmatpush2.bf16.msra.mxu0 0
      %728 = vmatprep.subr.bf16.mxu0 0
      %729 = vmatpush2.bf16.msra.mxu0 0
      %730 = vmatprep.subr.bf16.mxu0 0
      %731 = vmatpush2.bf16.msra.mxu0 0
      %732 = vmatprep.subr.bf16.mxu0 0
      %733 = vmatpush2.bf16.msra.mxu0 0
      %734 = vmatprep.subr.bf16.mxu0 %v640
      %735 = vmatpush2.bf16.msra.mxu0 %v639
      %736 = vmatprep.subr.bf16.mxu0 %v636
      %737 = vmatpush2.bf16.msra.mxu0 %v635
      %738 = vmatprep.subr.bf16.mxu0 %v632
      %739 = vmatpush2.bf16.msra.mxu0 %v631
      %740 = vmatprep.subr.bf16.mxu0 %v628
      %741 = vmatpush2.bf16.msra.mxu0 %v627
      %742 = vmatprep.mubr.bf16.mxu0 %v693
      %743 = vmatmul.mubr.bf16.gmra.mxu0 %v433
      %v744 = vpop.f32.mrf.mxu0
      %v745 = vadd.f32 %v340, %v744
      %v746 = vpop.f32.mrf.mxu0
      %v747 = vadd.f32 %v340, %v746
      %v748 = vpop.f32.mrf.mxu0
      %v749 = vadd.f32 %v345, %v748
      %v750 = vpop.f32.mrf.mxu0
      %v751 = vadd.f32 %v345, %v750
      %752 = vmatprep.mubr.bf16.mxu0 %v696
      %753 = vmatmul.mubr.bf16.gmra.mxu0 %v435
      %v754 = vpop.f32.mrf.mxu0
      %v755 = vadd.f32 %v350, %v754
      %v756 = vpop.f32.mrf.mxu0
      %v757 = vadd.f32 %v350, %v756
      %v758 = vpop.f32.mrf.mxu0
      %v759 = vadd.f32 %v355, %v758
      %v760 = vpop.f32.mrf.mxu0
      %v761 = vadd.f32 %v355, %v760
      %762 = vmatprep.mubr.bf16.mxu0 %v699
      %763 = vmatmul.mubr.bf16.gmra.mxu0 %v437
      %v764 = vpop.f32.mrf.mxu0
      %v765 = vadd.f32 %v360, %v764
      %v766 = vpop.f32.mrf.mxu0
      %v767 = vadd.f32 %v360, %v766
      %v768 = vpop.f32.mrf.mxu0
      %v769 = vadd.f32 %v365, %v768
      %v770 = vpop.f32.mrf.mxu0
      %v771 = vadd.f32 %v365, %v770
      %772 = vmatprep.mubr.bf16.mxu0 %v702
      %773 = vmatmul.mubr.bf16.gmra.mxu0 %v439
      %v774 = vpop.f32.mrf.mxu0
      %v775 = vadd.f32 %v370, %v774
      %v776 = vpop.f32.mrf.mxu0
      %v777 = vadd.f32 %v370, %v776
      %v778 = vpop.f32.mrf.mxu0
      %v779 = vadd.f32 %v375, %v778
      %v780 = vpop.f32.mrf.mxu0
      %v781 = vadd.f32 %v375, %v780
      %782 = vmatprep.mubr.bf16.mxu0 %v705
      %783 = vmatmul.mubr.bf16.gmra.mxu0 %v441
      %v784 = vpop.f32.mrf.mxu0
      %v785 = vadd.f32 %v380, %v784
      %v786 = vpop.f32.mrf.mxu0
      %v787 = vadd.f32 %v380, %v786
      %v788 = vpop.f32.mrf.mxu0
      %v789 = vadd.f32 %v385, %v788
      %v790 = vpop.f32.mrf.mxu0
      %v791 = vadd.f32 %v385, %v790
      %792 = vmatprep.mubr.bf16.mxu0 %v708
      %793 = vmatmul.mubr.bf16.gmra.mxu0 %v443
      %v794 = vpop.f32.mrf.mxu0
      %v795 = vadd.f32 %v390, %v794
      %v796 = vpop.f32.mrf.mxu0
      %v797 = vadd.f32 %v390, %v796
      %v798 = vpop.f32.mrf.mxu0
      %v799 = vadd.f32 %v395, %v798
      %v800 = vpop.f32.mrf.mxu0
      %v801 = vadd.f32 %v395, %v800
      %802 = vdwg.mxu0
      %803 = vmatprep.subr.bf16.mxu0 %v626
      %804 = vmatpush1.bf16.msra.mxu0 %v625
      %805 = vmatprep.subr.bf16.mxu0 %v622
      %806 = vmatpush1.bf16.msra.mxu0 %v621
      %807 = vmatprep.subr.bf16.mxu0 %v618
      %808 = vmatpush1.bf16.msra.mxu0 %v617
      %809 = vmatprep.subr.bf16.mxu0 %v614
      %810 = vmatpush1.bf16.msra.mxu0 %v613
      %811 = vmatprep.subr.bf16.mxu0 %v610
      %812 = vmatpush1.bf16.msra.mxu0 %v609
      %813 = vmatprep.subr.bf16.mxu0 %v606
      %814 = vmatpush1.bf16.msra.mxu0 %v605
      %815 = vmatprep.subr.bf16.mxu0 %v602
      %816 = vmatpush1.bf16.msra.mxu0 %v601
      %817 = vmatprep.subr.bf16.mxu0 %v598
      %818 = vmatpush1.bf16.msra.mxu0 %v597
      %819 = vmatprep.subr.bf16.mxu0 0
      %820 = vmatpush2.bf16.msra.mxu0 0
      %821 = vmatprep.subr.bf16.mxu0 0
      %822 = vmatpush2.bf16.msra.mxu0 0
      %823 = vmatprep.subr.bf16.mxu0 0
      %824 = vmatpush2.bf16.msra.mxu0 0
      %825 = vmatprep.subr.bf16.mxu0 0
      %826 = vmatpush2.bf16.msra.mxu0 0
      %827 = vmatprep.subr.bf16.mxu0 %v642
      %828 = vmatpush2.bf16.msra.mxu0 %v641
      %829 = vmatprep.subr.bf16.mxu0 %v638
      %830 = vmatpush2.bf16.msra.mxu0 %v637
      %831 = vmatprep.subr.bf16.mxu0 %v634
      %832 = vmatpush2.bf16.msra.mxu0 %v633
      %833 = vmatprep.subr.bf16.mxu0 %v630
      %834 = vmatpush2.bf16.msra.mxu0 %v629
      %835 = vmatprep.mubr.bf16.mxu0 %v693
      %836 = vmatmul.mubr.bf16.gmra.mxu0 %v433
      %v837 = vpop.f32.mrf.mxu0
      %v838 = vadd.f32 %v340, %v837
      %v839 = vpop.f32.mrf.mxu0
      %v840 = vadd.f32 %v340, %v839
      %v841 = vpop.f32.mrf.mxu0
      %v842 = vadd.f32 %v345, %v841
      %v843 = vpop.f32.mrf.mxu0
      %v844 = vadd.f32 %v345, %v843
      %845 = vmatprep.mubr.bf16.mxu0 %v696
      %846 = vmatmul.mubr.bf16.gmra.mxu0 %v435
      %v847 = vpop.f32.mrf.mxu0
      %v848 = vadd.f32 %v350, %v847
      %v849 = vpop.f32.mrf.mxu0
      %v850 = vadd.f32 %v350, %v849
      %v851 = vpop.f32.mrf.mxu0
      %v852 = vadd.f32 %v355, %v851
      %v853 = vpop.f32.mrf.mxu0
      %v854 = vadd.f32 %v355, %v853
      %855 = vmatprep.mubr.bf16.mxu0 %v699
      %856 = vmatmul.mubr.bf16.gmra.mxu0 %v437
      %v857 = vpop.f32.mrf.mxu0
      %v858 = vadd.f32 %v360, %v857
      %v859 = vpop.f32.mrf.mxu0
      %v860 = vadd.f32 %v360, %v859
      %v861 = vpop.f32.mrf.mxu0
      %v862 = vadd.f32 %v365, %v861
      %v863 = vpop.f32.mrf.mxu0
      %v864 = vadd.f32 %v365, %v863
      %865 = vmatprep.mubr.bf16.mxu0 %v702
      %866 = vmatmul.mubr.bf16.gmra.mxu0 %v439
      %v867 = vpop.f32.mrf.mxu0
      %v868 = vadd.f32 %v370, %v867
      %v869 = vpop.f32.mrf.mxu0
      %v870 = vadd.f32 %v370, %v869
      %v871 = vpop.f32.mrf.mxu0
      %v872 = vadd.f32 %v375, %v871
      %v873 = vpop.f32.mrf.mxu0
      %v874 = vadd.f32 %v375, %v873
      %875 = vmatprep.mubr.bf16.mxu0 %v705
      %876 = vmatmul.mubr.bf16.gmra.mxu0 %v441
      %v877 = vpop.f32.mrf.mxu0
      %v878 = vadd.f32 %v380, %v877
      %v879 = vpop.f32.mrf.mxu0
      %v880 = vadd.f32 %v380, %v879
      %v881 = vpop.f32.mrf.mxu0
      %v882 = vadd.f32 %v385, %v881
      %v883 = vpop.f32.mrf.mxu0
      %v884 = vadd.f32 %v385, %v883
      %885 = vmatprep.mubr.bf16.mxu0 %v708
      %886 = vmatmul.mubr.bf16.gmra.mxu0 %v443
      %v887 = vpop.f32.mrf.mxu0
      %v888 = vadd.f32 %v390, %v887
      %v889 = vpop.f32.mrf.mxu0
      %v890 = vadd.f32 %v390, %v889
      %v891 = vpop.f32.mrf.mxu0
      %v892 = vadd.f32 %v395, %v891
      %v893 = vpop.f32.mrf.mxu0
      %v894 = vadd.f32 %v395, %v893
      %895 = vdwg.mxu0
      %v896 = vadd.f32 %v745, %v749
      %v897 = vadd.f32 %v896, %v755
      %v898 = vadd.f32 %v897, %v759
      %v899 = vadd.f32 %v898, %v765
      %v900 = vadd.f32 %v899, %v769
      %v901 = vadd.f32 %v900, %v775
      %v902 = vadd.f32 %v901, %v779
      %v903 = vadd.f32 %v902, %v785
      %v904 = vadd.f32 %v903, %v789
      %v905 = vadd.f32 %v904, %v795
      %v906 = vadd.f32 %v905, %v799
      %v907 = vrot.slane %v906, 4
      %v908 = vadd.f32 %v906, %v907
      %v909 = vrot.slane %v908, 2
      %v910 = vadd.f32 %v908, %v909
      %v911 = vrot.slane %v910, 1
      %v912 = vadd.f32 %v910, %v911
      %v913 = vadd.f32 %v747, %v751
      %v914 = vadd.f32 %v913, %v757
      %v915 = vadd.f32 %v914, %v761
      %v916 = vadd.f32 %v915, %v767
      %v917 = vadd.f32 %v916, %v771
      %v918 = vadd.f32 %v917, %v777
      %v919 = vadd.f32 %v918, %v781
      %v920 = vadd.f32 %v919, %v787
      %v921 = vadd.f32 %v920, %v791
      %v922 = vadd.f32 %v921, %v797
      %v923 = vadd.f32 %v922, %v801
      %v924 = vrot.slane %v923, 4
      %v925 = vadd.f32 %v923, %v924
      %v926 = vrot.slane %v925, 2
      %v927 = vadd.f32 %v925, %v926
      %v928 = vrot.slane %v927, 1
      %v929 = vadd.f32 %v927, %v928
      %v930 = vadd.f32 %v838, %v842
      %v931 = vadd.f32 %v930, %v848
      %v932 = vadd.f32 %v931, %v852
      %v933 = vadd.f32 %v932, %v858
      %v934 = vadd.f32 %v933, %v862
      %v935 = vadd.f32 %v934, %v868
      %v936 = vadd.f32 %v935, %v872
      %v937 = vadd.f32 %v936, %v878
      %v938 = vadd.f32 %v937, %v882
      %v939 = vadd.f32 %v938, %v888
      %v940 = vadd.f32 %v939, %v892
      %v941 = vrot.slane %v940, 4
      %v942 = vadd.f32 %v940, %v941
      %v943 = vrot.slane %v942, 2
      %v944 = vadd.f32 %v942, %v943
      %v945 = vrot.slane %v944, 1
      %v946 = vadd.f32 %v944, %v945
      %v947 = vadd.f32 %v840, %v844
      %v948 = vadd.f32 %v947, %v850
      %v949 = vadd.f32 %v948, %v854
      %v950 = vadd.f32 %v949, %v860
      %v951 = vadd.f32 %v950, %v864
      %v952 = vadd.f32 %v951, %v870
      %v953 = vadd.f32 %v952, %v874
      %v954 = vadd.f32 %v953, %v880
      %v955 = vadd.f32 %v954, %v884
      %v956 = vadd.f32 %v955, %v890
      %v957 = vadd.f32 %v956, %v894
      %v958 = vrot.slane %v957, 4
      %v959 = vadd.f32 %v957, %v958
      %v960 = vrot.slane %v959, 2
      %v961 = vadd.f32 %v959, %v960
      %v962 = vrot.slane %v961, 1
      %v963 = vadd.f32 %v961, %v962
      %v964 = vrcp.pop 96.0
      %v965 = vmul.f32 %v912, %v964
      %v966 = vmul.f32 %v929, %v964
      %v967 = vmul.f32 %v946, %v964
      %v968 = vmul.f32 %v963, %v964
      %v969 = vsub.f32 %v745, %v965
      %v970 = vsub.f32 %v747, %v966
      %v971 = vsub.f32 %v838, %v967
      %v972 = vsub.f32 %v840, %v968
      %v973 = vsub.f32 %v749, %v965
      %v974 = vsub.f32 %v751, %v966
      %v975 = vsub.f32 %v842, %v967
      %v976 = vsub.f32 %v844, %v968
      %v977 = vsub.f32 %v755, %v965
      %v978 = vsub.f32 %v757, %v966
      %v979 = vsub.f32 %v848, %v967
      %v980 = vsub.f32 %v850, %v968
      %v981 = vsub.f32 %v759, %v965
      %v982 = vsub.f32 %v761, %v966
      %v983 = vsub.f32 %v852, %v967
      %v984 = vsub.f32 %v854, %v968
      %v985 = vsub.f32 %v765, %v965
      %v986 = vsub.f32 %v767, %v966
      %v987 = vsub.f32 %v858, %v967
      %v988 = vsub.f32 %v860, %v968
      %v989 = vsub.f32 %v769, %v965
      %v990 = vsub.f32 %v771, %v966
      %v991 = vsub.f32 %v862, %v967
      %v992 = vsub.f32 %v864, %v968
      %v993 = vsub.f32 %v775, %v965
      %v994 = vsub.f32 %v777, %v966
      %v995 = vsub.f32 %v868, %v967
      %v996 = vsub.f32 %v870, %v968
      %v997 = vsub.f32 %v779, %v965
      %v998 = vsub.f32 %v781, %v966
      %v999 = vsub.f32 %v872, %v967
      %v1000 = vsub.f32 %v874, %v968
      %v1001 = vsub.f32 %v785, %v965
      %v1002 = vsub.f32 %v787, %v966
      %v1003 = vsub.f32 %v878, %v967
      %v1004 = vsub.f32 %v880, %v968
      %v1005 = vsub.f32 %v789, %v965
      %v1006 = vsub.f32 %v791, %v966
      %v1007 = vsub.f32 %v882, %v967
      %v1008 = vsub.f32 %v884, %v968
      %v1009 = vsub.f32 %v795, %v965
      %v1010 = vsub.f32 %v797, %v966
      %v1011 = vsub.f32 %v888, %v967
      %v1012 = vsub.f32 %v890, %v968
      %v1013 = vsub.f32 %v799, %v965
      %v1014 = vsub.f32 %v801, %v966
      %v1015 = vsub.f32 %v892, %v967
      %v1016 = vsub.f32 %v894, %v968
      %v1017 = vmul.f32 %v969, %v969
      %v1018 = vmul.f32 %v970, %v970
      %v1019 = vmul.f32 %v971, %v971
      %v1020 = vmul.f32 %v972, %v972
      %v1021 = vmul.f32 %v973, %v973
      %v1022 = vmul.f32 %v974, %v974
      %v1023 = vmul.f32 %v975, %v975
      %v1024 = vmul.f32 %v976, %v976
      %v1025 = vmul.f32 %v977, %v977
      %v1026 = vmul.f32 %v978, %v978
      %v1027 = vmul.f32 %v979, %v979
      %v1028 = vmul.f32 %v980, %v980
      %v1029 = vmul.f32 %v981, %v981
      %v1030 = vmul.f32 %v982, %v982
      %v1031 = vmul.f32 %v983, %v983
      %v1032 = vmul.f32 %v984, %v984
      %v1033 = vmul.f32 %v985, %v985
      %v1034 = vmul.f32 %v986, %v986
      %v1035 = vmul.f32 %v987, %v987
      %v1036 = vmul.f32 %v988, %v988
      %v1037 = vmul.f32 %v989, %v989
      %v1038 = vmul.f32 %v990, %v990
      %v1039 = vmul.f32 %v991, %v991
      %v1040 = vmul.f32 %v992, %v992
      %v1041 = vmul.f32 %v993, %v993
      %v1042 = vmul.f32 %v994, %v994
      %v1043 = vmul.f32 %v995, %v995
      %v1044 = vmul.f32 %v996, %v996
      %v1045 = vmul.f32 %v997, %v997
      %v1046 = vmul.f32 %v998, %v998
      %v1047 = vmul.f32 %v999, %v999
      %v1048 = vmul.f32 %v1000, %v1000
      %v1049 = vmul.f32 %v1001, %v1001
      %v1050 = vmul.f32 %v1002, %v1002
      %v1051 = vmul.f32 %v1003, %v1003
      %v1052 = vmul.f32 %v1004, %v1004
      %v1053 = vmul.f32 %v1005, %v1005
      %v1054 = vmul.f32 %v1006, %v1006
      %v1055 = vmul.f32 %v1007, %v1007
      %v1056 = vmul.f32 %v1008, %v1008
      %v1057 = vmul.f32 %v1009, %v1009
      %v1058 = vmul.f32 %v1010, %v1010
      %v1059 = vmul.f32 %v1011, %v1011
      %v1060 = vmul.f32 %v1012, %v1012
      %v1061 = vmul.f32 %v1013, %v1013
      %v1062 = vmul.f32 %v1014, %v1014
      %v1063 = vmul.f32 %v1015, %v1015
      %v1064 = vmul.f32 %v1016, %v1016
      %v1065 = vadd.f32 %v1017, %v1021
      %v1066 = vadd.f32 %v1065, %v1025
      %v1067 = vadd.f32 %v1066, %v1029
      %v1068 = vadd.f32 %v1067, %v1033
      %v1069 = vadd.f32 %v1068, %v1037
      %v1070 = vadd.f32 %v1069, %v1041
      %v1071 = vadd.f32 %v1070, %v1045
      %v1072 = vadd.f32 %v1071, %v1049
      %v1073 = vadd.f32 %v1072, %v1053
      %v1074 = vadd.f32 %v1073, %v1057
      %v1075 = vadd.f32 %v1074, %v1061
      %v1076 = vrot.slane %v1075, 4
      %v1077 = vadd.f32 %v1075, %v1076
      %v1078 = vrot.slane %v1077, 2
      %v1079 = vadd.f32 %v1077, %v1078
      %v1080 = vrot.slane %v1079, 1
      %v1081 = vadd.f32 %v1079, %v1080
      %v1082 = vadd.f32 %v1018, %v1022
      %v1083 = vadd.f32 %v1082, %v1026
      %v1084 = vadd.f32 %v1083, %v1030
      %v1085 = vadd.f32 %v1084, %v1034
      %v1086 = vadd.f32 %v1085, %v1038
      %v1087 = vadd.f32 %v1086, %v1042
      %v1088 = vadd.f32 %v1087, %v1046
      %v1089 = vadd.f32 %v1088, %v1050
      %v1090 = vadd.f32 %v1089, %v1054
      %v1091 = vadd.f32 %v1090, %v1058
      %v1092 = vadd.f32 %v1091, %v1062
      %v1093 = vrot.slane %v1092, 4
      %v1094 = vadd.f32 %v1092, %v1093
      %v1095 = vrot.slane %v1094, 2
      %v1096 = vadd.f32 %v1094, %v1095
      %v1097 = vrot.slane %v1096, 1
      %v1098 = vadd.f32 %v1096, %v1097
      %v1099 = vadd.f32 %v1019, %v1023
      %v1100 = vadd.f32 %v1099, %v1027
      %v1101 = vadd.f32 %v1100, %v1031
      %v1102 = vadd.f32 %v1101, %v1035
      %v1103 = vadd.f32 %v1102, %v1039
      %v1104 = vadd.f32 %v1103, %v1043
      %v1105 = vadd.f32 %v1104, %v1047
      %v1106 = vadd.f32 %v1105, %v1051
      %v1107 = vadd.f32 %v1106, %v1055
      %v1108 = vadd.f32 %v1107, %v1059
      %v1109 = vadd.f32 %v1108, %v1063
      %v1110 = vrot.slane %v1109, 4
      %v1111 = vadd.f32 %v1109, %v1110
      %v1112 = vrot.slane %v1111, 2
      %v1113 = vadd.f32 %v1111, %v1112
      %v1114 = vrot.slane %v1113, 1
      %v1115 = vadd.f32 %v1113, %v1114
      %v1116 = vadd.f32 %v1020, %v1024
      %v1117 = vadd.f32 %v1116, %v1028
      %v1118 = vadd.f32 %v1117, %v1032
      %v1119 = vadd.f32 %v1118, %v1036
      %v1120 = vadd.f32 %v1119, %v1040
      %v1121 = vadd.f32 %v1120, %v1044
      %v1122 = vadd.f32 %v1121, %v1048
      %v1123 = vadd.f32 %v1122, %v1052
      %v1124 = vadd.f32 %v1123, %v1056
      %v1125 = vadd.f32 %v1124, %v1060
      %v1126 = vadd.f32 %v1125, %v1064
      %v1127 = vrot.slane %v1126, 4
      %v1128 = vadd.f32 %v1126, %v1127
      %v1129 = vrot.slane %v1128, 2
      %v1130 = vadd.f32 %v1128, %v1129
      %v1131 = vrot.slane %v1130, 1
      %v1132 = vadd.f32 %v1130, %v1131
      %v1133 = vmul.f32 %v1081, %v964
      %v1134 = vmul.f32 %v1098, %v964
      %v1135 = vmul.f32 %v1115, %v964
      %v1136 = vmul.f32 %v1132, %v964
      %v1137 = vadd.f32 %v1133, 1e-05
      %v1138 = vadd.f32 %v1134, 1e-05
      %v1139 = vadd.f32 %v1135, 1e-05
      %v1140 = vadd.f32 %v1136, 1e-05
      %v1141 = vrsqrt.pop %v1137
      %v1142 = vrsqrt.pop %v1138
      %v1143 = vrsqrt.pop %v1139
      %v1144 = vrsqrt.pop %v1140
      %v1145 = vmul.f32 %v969, %v1141
      %v1146 = vmul.f32 %v970, %v1142
      %v1147 = vmul.f32 %v971, %v1143
      %v1148 = vmul.f32 %v972, %v1144
      %v1149 = vmul.f32 %v973, %v1141
      %v1150 = vmul.f32 %v974, %v1142
      %v1151 = vmul.f32 %v975, %v1143
      %v1152 = vmul.f32 %v976, %v1144
      %v1153 = vmul.f32 %v977, %v1141
      %v1154 = vmul.f32 %v978, %v1142
      %v1155 = vmul.f32 %v979, %v1143
      %v1156 = vmul.f32 %v980, %v1144
      %v1157 = vmul.f32 %v981, %v1141
      %v1158 = vmul.f32 %v982, %v1142
      %v1159 = vmul.f32 %v983, %v1143
      %v1160 = vmul.f32 %v984, %v1144
      %v1161 = vmul.f32 %v985, %v1141
      %v1162 = vmul.f32 %v986, %v1142
      %v1163 = vmul.f32 %v987, %v1143
      %v1164 = vmul.f32 %v988, %v1144
      %v1165 = vmul.f32 %v989, %v1141
      %v1166 = vmul.f32 %v990, %v1142
      %v1167 = vmul.f32 %v991, %v1143
      %v1168 = vmul.f32 %v992, %v1144
      %v1169 = vmul.f32 %v993, %v1141
      %v1170 = vmul.f32 %v994, %v1142
      %v1171 = vmul.f32 %v995, %v1143
      %v1172 = vmul.f32 %v996, %v1144
      %v1173 = vmul.f32 %v997, %v1141
      %v1174 = vmul.f32 %v998, %v1142
      %v1175 = vmul.f32 %v999, %v1143
      %v1176 = vmul.f32 %v1000, %v1144
      %v1177 = vmul.f32 %v1001, %v1141
      %v1178 = vmul.f32 %v1002, %v1142
      %v1179 = vmul.f32 %v1003, %v1143
      %v1180 = vmul.f32 %v1004, %v1144
      %v1181 = vmul.f32 %v1005, %v1141
      %v1182 = vmul.f32 %v1006, %v1142
      %v1183 = vmul.f32 %v1007, %v1143
      %v1184 = vmul.f32 %v1008, %v1144
      %v1185 = vmul.f32 %v1009, %v1141
      %v1186 = vmul.f32 %v1010, %v1142
      %v1187 = vmul.f32 %v1011, %v1143
      %v1188 = vmul.f32 %v1012, %v1144
      %v1189 = vmul.f32 %v1013, %v1141
      %v1190 = vmul.f32 %v1014, %v1142
      %v1191 = vmul.f32 %v1015, %v1143
      %v1192 = vmul.f32 %v1016, %v1144
      %v1193 = vld [vmem:[%s3] sm:$0xff]
      %v1194 = vld [vmem:[%s3 + $0x8] sm:$0xff]
      %v1195 = vld [vmem:[%s3 + $0x10] sm:$0xff]
      %v1196 = vld [vmem:[%s3 + $0x18] sm:$0xff]
      %v1197 = vld [vmem:[%s3 + $0x20] sm:$0xff]
      %v1198 = vld [vmem:[%s3 + $0x28] sm:$0xff]
      %v1199 = vld [vmem:[%s3 + $0x30] sm:$0xff]
      %v1200 = vld [vmem:[%s3 + $0x38] sm:$0xff]
      %v1201 = vld [vmem:[%s3 + $0x40] sm:$0xff]
      %v1202 = vld [vmem:[%s3 + $0x48] sm:$0xff]
      %v1203 = vld [vmem:[%s3 + $0x50] sm:$0xff]
      %v1204 = vld [vmem:[%s3 + $0x58] sm:$0xff]
      %1206 = vset.pattern.permute.xlu0 0
      %1207 = vperm.xlu0 %1206, %v1193
      %v1208 = vpop.permute.xlu0 %1207
      %1211 = vset.pattern.permute.xlu0 0
      %1212 = vperm.xlu0 %1211, %v1194
      %v1213 = vpop.permute.xlu0 %1212
      %1216 = vset.pattern.permute.xlu0 0
      %1217 = vperm.xlu0 %1216, %v1195
      %v1218 = vpop.permute.xlu0 %1217
      %1221 = vset.pattern.permute.xlu0 0
      %1222 = vperm.xlu0 %1221, %v1196
      %v1223 = vpop.permute.xlu0 %1222
      %1226 = vset.pattern.permute.xlu0 0
      %1227 = vperm.xlu0 %1226, %v1197
      %v1228 = vpop.permute.xlu0 %1227
      %1231 = vset.pattern.permute.xlu0 0
      %1232 = vperm.xlu0 %1231, %v1198
      %v1233 = vpop.permute.xlu0 %1232
      %1236 = vset.pattern.permute.xlu0 0
      %1237 = vperm.xlu0 %1236, %v1199
      %v1238 = vpop.permute.xlu0 %1237
      %1241 = vset.pattern.permute.xlu0 0
      %1242 = vperm.xlu0 %1241, %v1200
      %v1243 = vpop.permute.xlu0 %1242
      %1246 = vset.pattern.permute.xlu0 0
      %1247 = vperm.xlu0 %1246, %v1201
      %v1248 = vpop.permute.xlu0 %1247
      %1251 = vset.pattern.permute.xlu0 0
      %1252 = vperm.xlu0 %1251, %v1202
      %v1253 = vpop.permute.xlu0 %1252
      %1256 = vset.pattern.permute.xlu0 0
      %1257 = vperm.xlu0 %1256, %v1203
      %v1258 = vpop.permute.xlu0 %1257
      %1261 = vset.pattern.permute.xlu0 0
      %1262 = vperm.xlu0 %1261, %v1204
      %v1263 = vpop.permute.xlu0 %1262
      %v1265 = vmul.f32 %v1145, %v1208
      %v1266 = vmul.f32 %v1146, %v1208
      %v1267 = vmul.f32 %v1147, %v1208
      %v1268 = vmul.f32 %v1148, %v1208
      %v1269 = vmul.f32 %v1149, %v1213
      %v1270 = vmul.f32 %v1150, %v1213
      %v1271 = vmul.f32 %v1151, %v1213
      %v1272 = vmul.f32 %v1152, %v1213
      %v1273 = vmul.f32 %v1153, %v1218
      %v1274 = vmul.f32 %v1154, %v1218
      %v1275 = vmul.f32 %v1155, %v1218
      %v1276 = vmul.f32 %v1156, %v1218
      %v1277 = vmul.f32 %v1157, %v1223
      %v1278 = vmul.f32 %v1158, %v1223
      %v1279 = vmul.f32 %v1159, %v1223
      %v1280 = vmul.f32 %v1160, %v1223
      %v1281 = vmul.f32 %v1161, %v1228
      %v1282 = vmul.f32 %v1162, %v1228
      %v1283 = vmul.f32 %v1163, %v1228
      %v1284 = vmul.f32 %v1164, %v1228
      %v1285 = vmul.f32 %v1165, %v1233
      %v1286 = vmul.f32 %v1166, %v1233
      %v1287 = vmul.f32 %v1167, %v1233
      %v1288 = vmul.f32 %v1168, %v1233
      %v1289 = vmul.f32 %v1169, %v1238
      %v1290 = vmul.f32 %v1170, %v1238
      %v1291 = vmul.f32 %v1171, %v1238
      %v1292 = vmul.f32 %v1172, %v1238
      %v1293 = vmul.f32 %v1173, %v1243
      %v1294 = vmul.f32 %v1174, %v1243
      %v1295 = vmul.f32 %v1175, %v1243
      %v1296 = vmul.f32 %v1176, %v1243
      %v1297 = vmul.f32 %v1177, %v1248
      %v1298 = vmul.f32 %v1178, %v1248
      %v1299 = vmul.f32 %v1179, %v1248
      %v1300 = vmul.f32 %v1180, %v1248
      %v1301 = vmul.f32 %v1181, %v1253
      %v1302 = vmul.f32 %v1182, %v1253
      %v1303 = vmul.f32 %v1183, %v1253
      %v1304 = vmul.f32 %v1184, %v1253
      %v1305 = vmul.f32 %v1185, %v1258
      %v1306 = vmul.f32 %v1186, %v1258
      %v1307 = vmul.f32 %v1187, %v1258
      %v1308 = vmul.f32 %v1188, %v1258
      %v1309 = vmul.f32 %v1189, %v1263
      %v1310 = vmul.f32 %v1190, %v1263
      %v1311 = vmul.f32 %v1191, %v1263
      %v1312 = vmul.f32 %v1192, %v1263
      %v1313 = vld [vmem:[%s4] sm:$0xff]
      %v1314 = vld [vmem:[%s4 + $0x8] sm:$0xff]
      %v1315 = vld [vmem:[%s4 + $0x10] sm:$0xff]
      %v1316 = vld [vmem:[%s4 + $0x18] sm:$0xff]
      %v1317 = vld [vmem:[%s4 + $0x20] sm:$0xff]
      %v1318 = vld [vmem:[%s4 + $0x28] sm:$0xff]
      %v1319 = vld [vmem:[%s4 + $0x30] sm:$0xff]
      %v1320 = vld [vmem:[%s4 + $0x38] sm:$0xff]
      %v1321 = vld [vmem:[%s4 + $0x40] sm:$0xff]
      %v1322 = vld [vmem:[%s4 + $0x48] sm:$0xff]
      %v1323 = vld [vmem:[%s4 + $0x50] sm:$0xff]
      %v1324 = vld [vmem:[%s4 + $0x58] sm:$0xff]
      %1326 = vset.pattern.permute.xlu0 0
      %1327 = vperm.xlu0 %1326, %v1313
      %v1328 = vpop.permute.xlu0 %1327
      %1331 = vset.pattern.permute.xlu0 0
      %1332 = vperm.xlu0 %1331, %v1314
      %v1333 = vpop.permute.xlu0 %1332
      %1336 = vset.pattern.permute.xlu0 0
      %1337 = vperm.xlu0 %1336, %v1315
      %v1338 = vpop.permute.xlu0 %1337
      %1341 = vset.pattern.permute.xlu0 0
      %1342 = vperm.xlu0 %1341, %v1316
      %v1343 = vpop.permute.xlu0 %1342
      %1346 = vset.pattern.permute.xlu0 0
      %1347 = vperm.xlu0 %1346, %v1317
      %v1348 = vpop.permute.xlu0 %1347
      %1351 = vset.pattern.permute.xlu0 0
      %1352 = vperm.xlu0 %1351, %v1318
      %v1353 = vpop.permute.xlu0 %1352
      %1356 = vset.pattern.permute.xlu0 0
      %1357 = vperm.xlu0 %1356, %v1319
      %v1358 = vpop.permute.xlu0 %1357
      %1361 = vset.pattern.permute.xlu0 0
      %1362 = vperm.xlu0 %1361, %v1320
      %v1363 = vpop.permute.xlu0 %1362
      %1366 = vset.pattern.permute.xlu0 0
      %1367 = vperm.xlu0 %1366, %v1321
      %v1368 = vpop.permute.xlu0 %1367
      %1371 = vset.pattern.permute.xlu0 0
      %1372 = vperm.xlu0 %1371, %v1322
      %v1373 = vpop.permute.xlu0 %1372
      %1376 = vset.pattern.permute.xlu0 0
      %1377 = vperm.xlu0 %1376, %v1323
      %v1378 = vpop.permute.xlu0 %1377
      %1381 = vset.pattern.permute.xlu0 0
      %1382 = vperm.xlu0 %1381, %v1324
      %v1383 = vpop.permute.xlu0 %1382
      %v1385 = vadd.f32 %v1265, %v1328
      %v1386 = vadd.f32 %v1266, %v1328
      %v1387 = vadd.f32 %v1267, %v1328
      %v1388 = vadd.f32 %v1268, %v1328
      %v1389 = vadd.f32 %v1269, %v1333
      %v1390 = vadd.f32 %v1270, %v1333
      %v1391 = vadd.f32 %v1271, %v1333
      %v1392 = vadd.f32 %v1272, %v1333
      %v1393 = vadd.f32 %v1273, %v1338
      %v1394 = vadd.f32 %v1274, %v1338
      %v1395 = vadd.f32 %v1275, %v1338
      %v1396 = vadd.f32 %v1276, %v1338
      %v1397 = vadd.f32 %v1277, %v1343
      %v1398 = vadd.f32 %v1278, %v1343
      %v1399 = vadd.f32 %v1279, %v1343
      %v1400 = vadd.f32 %v1280, %v1343
      %v1401 = vadd.f32 %v1281, %v1348
      %v1402 = vadd.f32 %v1282, %v1348
      %v1403 = vadd.f32 %v1283, %v1348
      %v1404 = vadd.f32 %v1284, %v1348
      %v1405 = vadd.f32 %v1285, %v1353
      %v1406 = vadd.f32 %v1286, %v1353
      %v1407 = vadd.f32 %v1287, %v1353
      %v1408 = vadd.f32 %v1288, %v1353
      %v1409 = vadd.f32 %v1289, %v1358
      %v1410 = vadd.f32 %v1290, %v1358
      %v1411 = vadd.f32 %v1291, %v1358
      %v1412 = vadd.f32 %v1292, %v1358
      %v1413 = vadd.f32 %v1293, %v1363
      %v1414 = vadd.f32 %v1294, %v1363
      %v1415 = vadd.f32 %v1295, %v1363
      %v1416 = vadd.f32 %v1296, %v1363
      %v1417 = vadd.f32 %v1297, %v1368
      %v1418 = vadd.f32 %v1298, %v1368
      %v1419 = vadd.f32 %v1299, %v1368
      %v1420 = vadd.f32 %v1300, %v1368
      %v1421 = vadd.f32 %v1301, %v1373
      %v1422 = vadd.f32 %v1302, %v1373
      %v1423 = vadd.f32 %v1303, %v1373
      %v1424 = vadd.f32 %v1304, %v1373
      %v1425 = vadd.f32 %v1305, %v1378
      %v1426 = vadd.f32 %v1306, %v1378
      %v1427 = vadd.f32 %v1307, %v1378
      %v1428 = vadd.f32 %v1308, %v1378
      %v1429 = vadd.f32 %v1309, %v1383
      %v1430 = vadd.f32 %v1310, %v1383
      %v1431 = vadd.f32 %v1311, %v1383
      %v1432 = vadd.f32 %v1312, %v1383
      %1433 = vst [vmem:[%s262] sm:$0xff] %v1385
      %1434 = vst [vmem:[%s262 + $0x8] sm:$0xff] %v1386
      %1435 = vst [vmem:[%s262 + $0x10] sm:$0xff] %v1387
      %1436 = vst [vmem:[%s262 + $0x18] sm:$0xff] %v1388
      %1437 = vst [vmem:[%s262 + $0x20] sm:$0xff] %v1389
      %1438 = vst [vmem:[%s262 + $0x28] sm:$0xff] %v1390
      %1439 = vst [vmem:[%s262 + $0x30] sm:$0xff] %v1391
      %1440 = vst [vmem:[%s262 + $0x38] sm:$0xff] %v1392
      %1441 = vst [vmem:[%s262 + $0x40] sm:$0xff] %v1393
      %1442 = vst [vmem:[%s262 + $0x48] sm:$0xff] %v1394
      %1443 = vst [vmem:[%s262 + $0x50] sm:$0xff] %v1395
      %1444 = vst [vmem:[%s262 + $0x58] sm:$0xff] %v1396
      %1445 = vst [vmem:[%s262 + $0x60] sm:$0xff] %v1397
      %1446 = vst [vmem:[%s262 + $0x68] sm:$0xff] %v1398
      %1447 = vst [vmem:[%s262 + $0x70] sm:$0xff] %v1399
      %1448 = vst [vmem:[%s262 + $0x78] sm:$0xff] %v1400
      %1449 = vst [vmem:[%s262 + $0x80] sm:$0xff] %v1401
      %1450 = vst [vmem:[%s262 + $0x88] sm:$0xff] %v1402
      %1451 = vst [vmem:[%s262 + $0x90] sm:$0xff] %v1403
      %1452 = vst [vmem:[%s262 + $0x98] sm:$0xff] %v1404
      %1453 = vst [vmem:[%s262 + $0xa0] sm:$0xff] %v1405
      %1454 = vst [vmem:[%s262 + $0xa8] sm:$0xff] %v1406
      %1455 = vst [vmem:[%s262 + $0xb0] sm:$0xff] %v1407
      %1456 = vst [vmem:[%s262 + $0xb8] sm:$0xff] %v1408
      %1457 = vst [vmem:[%s262 + $0xc0] sm:$0xff] %v1409
      %1458 = vst [vmem:[%s262 + $0xc8] sm:$0xff] %v1410
      %1459 = vst [vmem:[%s262 + $0xd0] sm:$0xff] %v1411
      %1460 = vst [vmem:[%s262 + $0xd8] sm:$0xff] %v1412
      %1461 = vst [vmem:[%s262 + $0xe0] sm:$0xff] %v1413
      %1462 = vst [vmem:[%s262 + $0xe8] sm:$0xff] %v1414
      %1463 = vst [vmem:[%s262 + $0xf0] sm:$0xff] %v1415
      %1464 = vst [vmem:[%s262 + $0xf8] sm:$0xff] %v1416
      %1465 = vst [vmem:[%s262 + $0x100] sm:$0xff] %v1417
      %1466 = vst [vmem:[%s262 + $0x108] sm:$0xff] %v1418
      %1467 = vst [vmem:[%s262 + $0x110] sm:$0xff] %v1419
      %1468 = vst [vmem:[%s262 + $0x118] sm:$0xff] %v1420
      %1469 = vst [vmem:[%s262 + $0x120] sm:$0xff] %v1421
      %1470 = vst [vmem:[%s262 + $0x128] sm:$0xff] %v1422
      %1471 = vst [vmem:[%s262 + $0x130] sm:$0xff] %v1423
      %1472 = vst [vmem:[%s262 + $0x138] sm:$0xff] %v1424
      %1473 = vst [vmem:[%s262 + $0x140] sm:$0xff] %v1425
      %1474 = vst [vmem:[%s262 + $0x148] sm:$0xff] %v1426
      %1475 = vst [vmem:[%s262 + $0x150] sm:$0xff] %v1427
      %1476 = vst [vmem:[%s262 + $0x158] sm:$0xff] %v1428
      %1477 = vst [vmem:[%s262 + $0x160] sm:$0xff] %v1429
      %1478 = vst [vmem:[%s262 + $0x168] sm:$0xff] %v1430
      %1479 = vst [vmem:[%s262 + $0x170] sm:$0xff] %v1431
      %1480 = vst [vmem:[%s262 + $0x178] sm:$0xff] %v1432
      %s1481 = smul.u32 4, %s21
      %p1482 = scmp.lt.s32.totalorder %s20, 1
      %s1483 = scalar_select %p1482, %s20, 1
      %p1484 = scmp.lt.s32.totalorder %s1481, 3
      %s1485 = scalar_select %p1484, %s1481, 3
      %s1486 = smul.addr %s1483, 48
      %s1487 = sadd.s32 %s1485, %s1486
      %s1488 = smul.addr %s1487, 8
      %s1489 = scalar_lea.vmem %s5, %s1488
      // Predicated region
      $region41: #{patch_embed_pallas.1} parent=39 // pred_check
        %p1490 = pneg %p160
      $region42: #{patch_embed_pallas.1} parent=39 // pred_check_branch
        %1492 = sbr.rel (%p1490) target = $region44
      $region43: #{patch_embed_pallas.1} parent=39 // pred_region
        %s1493 = smul.u32 4, %s21
      $region44: #{patch_embed_pallas.1} parent=39 // pred_fallthru
        _
    $region40: #{patch_embed_pallas.1} parent=5 // pred_fallthru
      _
    %p1494 = scmp.le.s32.totalorder 2, %s11
    // Predicated region
    $region45: #{patch_embed_pallas.1} parent=5 // pred_check
      %p1495 = pneg %p1494
    $region46: #{patch_embed_pallas.1} parent=5 // pred_check_branch
      %1497 = sbr.rel (%p1495) target = $region48
    $region47: #{patch_embed_pallas.1} parent=5 // pred_region
      %s1498 = ssub.s32 %s11, 2
      // Predicated region
      $region49: #{patch_embed_pallas.1} parent=47 // pred_check
        %p1499 = pneg %p166
      $region50: #{patch_embed_pallas.1} parent=47 // pred_check_branch
        %1501 = sbr.rel (%p1499) target = $region52
      $region51: #{patch_embed_pallas.1} parent=47 // pred_region
        %s1502 = smul.u32 4, %s23
        %p1503 = scmp.lt.s32.totalorder %s22, 1
        %s1504 = scalar_select %p1503, %s22, 1
        %p1505 = scmp.lt.s32.totalorder %s1502, 3
        %s1506 = scalar_select %p1505, %s1502, 3
        %s1507 = smul.addr %s1504, 48
        %s1508 = sadd.s32 %s1506, %s1507
        %s1509 = smul.addr %s1508, 8
        %s1510 = scalar_lea.vmem %s5, %s1509
      $region52: #{patch_embed_pallas.1} parent=47 // pred_fallthru
        _
    $region48: #{patch_embed_pallas.1} parent=5 // pred_fallthru
      _
  $region6: #{patch_embed_pallas.1} parent=0 // loop_footer
    %s15 = sadd.s32 1, %s11
  $region7: #{patch_embed_pallas.1} parent=0 // loop_footer_branch
    %10 = sbr.rel target = $region3
  $region8: #{patch_embed_pallas.1} parent=0 // loop_exit
    _

</llo_original>
